<compile_context>
chip_gen: v5e
topology: v5e:2x2
jax: 0.10.0
libtpu: 0.0.40
codegen_flags: <defaults>
</compile_context>

<pallas_src>
import functools

import numpy as np
import jax
import jax.numpy as jnp
from jax.experimental import pallas as pl
from jax.experimental.pallas import tpu as pltpu


# ----------------------------------------------------------------------------
# Parameter construction (deterministic, in-script)
# ----------------------------------------------------------------------------

# Standard IJG / Annex-K luminance quantization table (8x8).
_BASE_LUMA_QTABLE = np.array(
    [[16, 11, 10, 16, 24, 40, 51, 61],
     [12, 12, 14, 19, 26, 58, 60, 55],
     [14, 13, 16, 24, 40, 57, 69, 56],
     [14, 17, 22, 29, 51, 87, 80, 62],
     [18, 22, 37, 56, 68, 109, 103, 77],
     [24, 35, 55, 64, 81, 104, 113, 92],
     [49, 64, 78, 87, 103, 121, 120, 101],
     [72, 92, 95, 98, 112, 100, 103, 99]], dtype=np.float64)

_TM = 128          # row (sublane) tile; also the block-diag DCT matrix size
_LANE = 128        # column chunk width for the per-chunk column transform


def _quality_scaled_qtable(quality: int) -> np.ndarray:
    q = int(quality)
    q = max(1, min(100, q))
    if q < 50:
        scale = 5000.0 / q
    else:
        scale = 200.0 - 2.0 * q
    tab = np.floor((_BASE_LUMA_QTABLE * scale + 50.0) / 100.0)
    tab = np.clip(tab, 1.0, 255.0)
    return tab.astype(np.float32)


def _dct8_matrix() -> np.ndarray:
    # Orthonormal 8x8 DCT-II matrix T:  coeffs = T @ x @ T^T
    n = 8
    T = np.zeros((n, n), dtype=np.float64)
    for i in range(n):
        for j in range(n):
            if i == 0:
                T[i, j] = 1.0 / np.sqrt(n)
            else:
                T[i, j] = np.sqrt(2.0 / n) * np.cos(
                    (2 * j + 1) * i * np.pi / (2 * n))
    return T.astype(np.float32)


def _block_diag_dct(size: int) -> np.ndarray:
    # Block-diagonal matrix of 8x8 DCT blocks; applying it performs the per-8
    # block transform across an axis of length `size` (size % 8 == 0).
    assert size % 8 == 0
    T = _dct8_matrix()
    nb = size // 8
    D = np.zeros((size, size), dtype=np.float32)
    for b in range(nb):
        D[b * 8:(b + 1) * 8, b * 8:(b + 1) * 8] = T
    return D


def _round_up(x: int, m: int) -> int:
    return -(-x // m) * m


def _col_tiling(w: int):
    # Data-tile width: a multiple of 128, as wide as possible (<=512) while
    # keeping the padded width small (padding is processed, so it is waste).
    best_tw, best_wp = None, None
    for tw in (512, 384, 256, 128):
        wp = _round_up(w, tw)
        if best_wp is None or wp < best_wp:
            best_tw, best_wp = tw, wp
    return best_tw, best_wp


# ----------------------------------------------------------------------------
# Pallas kernel
# ----------------------------------------------------------------------------

def _jpeg_tile_kernel(n_chunks, x_ref, d_ref, dt_ref, qt_ref, qti_ref, o_ref):
    # x_ref:   (128, TWD) input tile of the stacked/padded (MP, WP) image.
    # d_ref:   (128, 128) bf16 block-diag 8x8 DCT matrix D;  dt_ref = D^T.
    # qt_ref:  (128, 128) f32 tiled quantization table;      qti_ref = 1 / qt.
    # o_ref:   (128, TWD) uint8 output tile.
    #
    # Forward:  C  = D @ X @ D^T   (block-diag => per-8x8-block 2-D DCT)
    # Quant:    Cq = round(C / qt) * qt
    # Inverse:  X' = D^T @ Cq @ D

    # Fold the f32 cast into the kernel; emulate the uint8 cast cv2 performs
    # before encoding (round + clip to [0, 255]).
    x = x_ref[...].astype(jnp.float32)
    x = jnp.clip(jnp.round(x), 0.0, 255.0) - 128.0
    xb = x.astype(jnp.bfloat16)

    d = d_ref[...]      # bf16
    dt = dt_ref[...]    # bf16
    qt = qt_ref[...]    # f32
    qti = qti_ref[...]  # f32

    # Forward row transform: one wide matmul, N = TWD (>= 256 when possible).
    t1 = jnp.dot(d, xb, preferred_element_type=jnp.float32)      # (128, TWD)

    # Column transform + quant/dequant + inverse column transform, per 128-lane
    # chunk with the same 128x128 block-diag matrix (FLOP waste stays 16x).
    chunks = []
    for c in range(n_chunks):
        t1c = t1[:, c * _LANE:(c + 1) * _LANE].astype(jnp.bfloat16)
        coef = jnp.dot(t1c, dt, preferred_element_type=jnp.float32)
        coef_q = jnp.round(coef * qti) * qt           # lossy JPEG step (f32)
        t2c = jnp.dot(coef_q.astype(jnp.bfloat16), d,
                      preferred_element_type=jnp.float32)
        chunks.append(t2c.astype(jnp.bfloat16))
    t2 = chunks[0] if n_chunks == 1 else jnp.concatenate(chunks, axis=1)

    # Inverse row transform: one wide matmul over the full tile width.
    rec = jnp.dot(dt, t2, preferred_element_type=jnp.float32)    # (128, TWD)

    rec = jnp.clip(jnp.round(rec + 128.0), 0.0, 255.0)
    o_ref[...] = rec.astype(o_ref.dtype)


# ----------------------------------------------------------------------------
# Wrapper
# ----------------------------------------------------------------------------

def jpeg_noise(encode_image: jax.Array, quality: int) -> jax.Array:
    """Simulated-JPEG noise layer. Input NCHW float, output NCHW uint8."""
    B, C, H, W = encode_image.shape
    # H % 8 == 0 keeps the 8-row DCT blocks aligned across stacked planes.
    assert H % 8 == 0 and W % 8 == 0, "JPEG block size is 8x8"

    M = B * C * H                       # stack all rows of all planes
    MP = _round_up(M, _TM)              # fixed 128-row tiles
    TWD, WP = _col_tiling(W)            # wide lane-dense data tile
    n_chunks = TWD // _LANE

    # Constant operands: one 128x128 block-diag DCT (bf16, pre-transposed copy)
    # and the tiled quantization table plus its reciprocal (f32).
    D = _block_diag_dct(_TM)
    d_bf16 = jnp.asarray(D, dtype=jnp.bfloat16)
    dt_bf16 = jnp.asarray(np.ascontiguousarray(D.T), dtype=jnp.bfloat16)
    qtab8 = _quality_scaled_qtable(quality)
    qt_np = np.tile(qtab8, (_TM // 8, _LANE // 8)).astype(np.float32)
    qt = jnp.asarray(qt_np)
    qti = jnp.asarray((1.0 / qt_np).astype(np.float32))

    # Pad with 128 so padded pixels give exactly-zero DCT coefficients; since
    # M and W are multiples of 8, padding occupies its own 8x8 blocks and
    # never contaminates valid output.
    x2d = encode_image.reshape(M, W)
    if (MP, WP) != (M, W):
        x2d = jnp.pad(x2d, ((0, MP - M), (0, WP - W)), constant_values=128)

    grid = (MP // _TM, WP // TWD)
    const_spec = pl.BlockSpec((_TM, _LANE), lambda i, j: (0, 0))

    # 4 matmuls over the padded image, each with K = 128 (block-diag).
    flops = 4 * 2 * MP * WP * _TM
    bytes_accessed = MP * WP * x2d.dtype.itemsize + MP * WP  # input + u8 out

    out = pl.pallas_call(
        functools.partial(_jpeg_tile_kernel, n_chunks),
        out_shape=jax.ShapeDtypeStruct((MP, WP), jnp.uint8),
        grid_spec=pltpu.PrefetchScalarGridSpec(
            num_scalar_prefetch=0,
            grid=grid,
            in_specs=[
                pl.BlockSpec((_TM, TWD), lambda i, j: (i, j)),   # image slab
                const_spec,                                      # D (bf16)
                const_spec,                                      # D^T (bf16)
                const_spec,                                      # q-table
                const_spec,                                      # 1 / q-table
            ],
            out_specs=pl.BlockSpec((_TM, TWD), lambda i, j: (i, j)),
        ),
        compiler_params=pltpu.CompilerParams(
            dimension_semantics=("parallel", "parallel")),
        cost_estimate=pl.CostEstimate(
            flops=flops, transcendentals=0, bytes_accessed=bytes_accessed),
    )(x2d, d_bf16, dt_bf16, qt, qti)

    out = out[:M, :W].reshape(B, C, H, W)
    return out


def new_jpeg_forward(noise_and_cover, quality: int):
    """Mirror of New_Jpeg.forward: replaces element 0 with JPEG-noised image."""
    encode_image = noise_and_cover[0]
    noise_img = jpeg_noise(encode_image, quality)
    out = list(noise_and_cover)
    out[0] = noise_img
    return out


if __name__ == "__main__":
    key = jax.random.PRNGKey(0)
    k1, k2 = jax.random.split(key)
    B, C, H, W = 2, 4, 16, 16
    # Pixel-range inputs (cv2.imwrite implicitly treats them as 0..255 images).
    encode_image = jax.random.uniform(k1, (B, C, H, W), jnp.float32,
                                      minval=0.0, maxval=255.0)
    cover_image = jax.random.uniform(k2, (B, C, H, W), jnp.float32,
                                     minval=0.0, maxval=255.0)

    Q = 50
    result = new_jpeg_forward([encode_image, cover_image], Q)
    noised = jax.block_until_ready(result[0])

    assert noised.shape == (B, C, H, W)
    assert noised.dtype == jnp.uint8
    print("KERNEL_OK")
</pallas_src>

<mosaic_0001>
module attributes {stable_mosaic.version = 11 : i64} {
  func.func @_jpeg_tile_kernel(%arg0: i32, %arg1: i32, %arg2: memref<128x128xf32, #tpu.memory_space<vmem>>, %arg3: memref<128x128xbf16, #tpu.memory_space<vmem>>, %arg4: memref<128x128xbf16, #tpu.memory_space<vmem>>, %arg5: memref<128x128xf32, #tpu.memory_space<vmem>>, %arg6: memref<128x128xf32, #tpu.memory_space<vmem>>, %arg7: memref<128x128xi8, #tpu.memory_space<vmem>>) attributes {dimension_semantics = [#tpu.dimension_semantics<parallel>, #tpu.dimension_semantics<parallel>], iteration_bounds = array<i64: 1, 1>, scalar_prefetch = 0 : i64, scratch_operands = 0 : i64, tpu.core_type = #tpu.core_type<tc>, window_params = [{transform_indices = @transform_0, window_bounds = array<i64: 128, 128>}, {pipeline_mode = #tpu.pipeline_mode<synchronous>, transform_indices = @transform_1, window_bounds = array<i64: 128, 128>}, {pipeline_mode = #tpu.pipeline_mode<synchronous>, transform_indices = @transform_2, window_bounds = array<i64: 128, 128>}, {pipeline_mode = #tpu.pipeline_mode<synchronous>, transform_indices = @transform_3, window_bounds = array<i64: 128, 128>}, {pipeline_mode = #tpu.pipeline_mode<synchronous>, transform_indices = @transform_4, window_bounds = array<i64: 128, 128>}, {transform_indices = @transform_5, window_bounds = array<i64: 128, 128>}]} {
    %c0 = arith.constant 0 : index
    %c0_0 = arith.constant 0 : index
    %0 = vector.load %arg2[%c0, %c0_0] : memref<128x128xf32, #tpu.memory_space<vmem>>, vector<128x128xf32>
    %1 = math.roundeven %0 : vector<128x128xf32>
    %cst = arith.constant 0.000000e+00 : f32
    %cst_1 = arith.constant 2.550000e+02 : f32
    %2 = vector.broadcast %cst : f32 to vector<128x128xf32>
    %3 = arith.maximumf %2, %1 : vector<128x128xf32>
    %4 = vector.broadcast %cst_1 : f32 to vector<128x128xf32>
    %5 = arith.minimumf %4, %3 : vector<128x128xf32>
    %cst_2 = arith.constant 1.280000e+02 : f32
    %6 = vector.broadcast %cst_2 : f32 to vector<128x128xf32>
    %7 = arith.subf %5, %6 : vector<128x128xf32>
    %8 = arith.truncf %7 : vector<128x128xf32> to vector<128x128xbf16>
    %c0_3 = arith.constant 0 : index
    %c0_4 = arith.constant 0 : index
    %9 = vector.load %arg3[%c0_3, %c0_4] : memref<128x128xbf16, #tpu.memory_space<vmem>>, vector<128x128xbf16>
    %c0_5 = arith.constant 0 : index
    %c0_6 = arith.constant 0 : index
    %10 = vector.load %arg4[%c0_5, %c0_6] : memref<128x128xbf16, #tpu.memory_space<vmem>>, vector<128x128xbf16>
    %c0_7 = arith.constant 0 : index
    %c0_8 = arith.constant 0 : index
    %11 = vector.load %arg5[%c0_7, %c0_8] : memref<128x128xf32, #tpu.memory_space<vmem>>, vector<128x128xf32>
    %c0_9 = arith.constant 0 : index
    %c0_10 = arith.constant 0 : index
    %12 = vector.load %arg6[%c0_9, %c0_10] : memref<128x128xf32, #tpu.memory_space<vmem>>, vector<128x128xf32>
    %cst_11 = arith.constant dense<0.000000e+00> : vector<128x128xf32>
    %13 = tpu.matmul %9, %8, %cst_11 {dimension_numbers = #tpu.dot_dimension_numbers<[1], [0], [0], [1], [0, 0, 1, 1], [], []>} : vector<128x128xbf16>, vector<128x128xbf16>, vector<128x128xf32> -> vector<128x128xf32>
    %14 = arith.truncf %13 : vector<128x128xf32> to vector<128x128xbf16>
    %cst_12 = arith.constant dense<0.000000e+00> : vector<128x128xf32>
    %15 = tpu.matmul %14, %10, %cst_12 {dimension_numbers = #tpu.dot_dimension_numbers<[1], [0], [0], [1], [0, 0, 1, 1], [], []>} : vector<128x128xbf16>, vector<128x128xbf16>, vector<128x128xf32> -> vector<128x128xf32>
    %16 = arith.mulf %15, %12 : vector<128x128xf32>
    %17 = math.roundeven %16 : vector<128x128xf32>
    %18 = arith.mulf %17, %11 : vector<128x128xf32>
    %19 = arith.truncf %18 : vector<128x128xf32> to vector<128x128xbf16>
    %cst_13 = arith.constant dense<0.000000e+00> : vector<128x128xf32>
    %20 = tpu.matmul %19, %9, %cst_13 {dimension_numbers = #tpu.dot_dimension_numbers<[1], [0], [0], [1], [0, 0, 1, 1], [], []>} : vector<128x128xbf16>, vector<128x128xbf16>, vector<128x128xf32> -> vector<128x128xf32>
    %21 = arith.truncf %20 : vector<128x128xf32> to vector<128x128xbf16>
    %cst_14 = arith.constant dense<0.000000e+00> : vector<128x128xf32>
    %22 = tpu.matmul %10, %21, %cst_14 {dimension_numbers = #tpu.dot_dimension_numbers<[1], [0], [0], [1], [0, 0, 1, 1], [], []>} : vector<128x128xbf16>, vector<128x128xbf16>, vector<128x128xf32> -> vector<128x128xf32>
    %cst_15 = arith.constant 1.280000e+02 : f32
    %23 = vector.broadcast %cst_15 : f32 to vector<128x128xf32>
    %24 = arith.addf %22, %23 : vector<128x128xf32>
    %25 = math.roundeven %24 : vector<128x128xf32>
    %cst_16 = arith.constant 0.000000e+00 : f32
    %cst_17 = arith.constant 2.550000e+02 : f32
    %26 = vector.broadcast %cst_16 : f32 to vector<128x128xf32>
    %27 = arith.maximumf %26, %25 : vector<128x128xf32>
    %28 = vector.broadcast %cst_17 : f32 to vector<128x128xf32>
    %29 = arith.minimumf %28, %27 : vector<128x128xf32>
    %30 = arith.fptoui %29 : vector<128x128xf32> to vector<128x128xi8>
    %c0_18 = arith.constant 0 : index
    %c0_19 = arith.constant 0 : index
    %31 = vector.load %arg7[%c0_18, %c0_19] : memref<128x128xi8, #tpu.memory_space<vmem>>, vector<128x128xi8>
    tpu.vector_store %arg7[%c0_18, %c0_19], %30 {strides = array<i32>} : memref<128x128xi8, #tpu.memory_space<vmem>>, vector<128x128xi8>,
    return
  }
  func.func @transform_0(%arg0: i32, %arg1: i32) -> (i32, i32) {
    %c0_i32 = arith.constant 0 : i32
    return %arg0, %arg1 : i32, i32
  }
  func.func @transform_1(%arg0: i32, %arg1: i32) -> (i32, i32) {
    %c0_i32 = arith.constant 0 : i32
    %c0_i32_0 = arith.constant 0 : i32
    %c0_i32_1 = arith.constant 0 : i32
    return %c0_i32, %c0_i32_0 : i32, i32
  }
  func.func @transform_2(%arg0: i32, %arg1: i32) -> (i32, i32) {
    %c0_i32 = arith.constant 0 : i32
    %c0_i32_0 = arith.constant 0 : i32
    %c0_i32_1 = arith.constant 0 : i32
    return %c0_i32, %c0_i32_0 : i32, i32
  }
  func.func @transform_3(%arg0: i32, %arg1: i32) -> (i32, i32) {
    %c0_i32 = arith.constant 0 : i32
    %c0_i32_0 = arith.constant 0 : i32
    %c0_i32_1 = arith.constant 0 : i32
    return %c0_i32, %c0_i32_0 : i32, i32
  }
  func.func @transform_4(%arg0: i32, %arg1: i32) -> (i32, i32) {
    %c0_i32 = arith.constant 0 : i32
    %c0_i32_0 = arith.constant 0 : i32
    %c0_i32_1 = arith.constant 0 : i32
    return %c0_i32, %c0_i32_0 : i32, i32
  }
  func.func @transform_5(%arg0: i32, %arg1: i32) -> (i32, i32) {
    %c0_i32 = arith.constant 0 : i32
    return %arg0, %arg1 : i32, i32
  }
}

</mosaic_0001>

<llo_original>
// kernel: tpu_custom_call.1
$region0: #{tpu_custom_call.1}
  #allocation0 [shape = 'u32[]', space=smem, size = 0x4, offset = 0x4, fixed_abs, tag = 'smem constant byte address 0x4 - core index']
  #allocation1 [shape = 'u32[72,128]{1,0:T(1,128)}', space=vmem, size = 0x9000, scoped, tag = 'internal scratch']
  %s0 = inlined_call_operand.hbm [shape: f32[128,128], index: 0, kind: input, shape index: {}]
  %s1 = inlined_call_operand.hbm [shape: bf16[128,128], index: 1, kind: input, shape index: {}]
  %s2 = inlined_call_operand.hbm [shape: bf16[128,128], index: 2, kind: input, shape index: {}]
  %s3 = inlined_call_operand.hbm [shape: f32[128,128], index: 3, kind: input, shape index: {}]
  %s4 = inlined_call_operand.hbm [shape: f32[128,128], index: 4, kind: input, shape index: {}]
  %s5 = inlined_call_operand.hbm [shape: u8[128,128], index: 5, kind: output, shape index: {}]
  %s6 = sld [smem:[#allocation0]]
  $region50: #{tpu_custom_call.1} parent=0
    _
  %s8 = ssub.s32 1, %s6
  %s9 = scalar_select 0, %s8, %s6
  $region1: #{tpu_custom_call.1} parent=0
    #allocation2 [shape = 'u8[65536]{0}', space=vmem, size = 0x10000, scoped, tag = 'input window, operand 0, single buffered']
    #allocation3 [shape = 's32[1]{0}', space=sflag, size = 0x4, scoped, tag = 'scoped memory for tpu_custom_call.1']
    #allocation4 [shape = 's32[1]{0}', space=sflag, size = 0x4, scoped, tag = 'scoped memory for tpu_custom_call.1']
    #allocation5 [shape = 'u8[32768]{0}', space=vmem, size = 0x8000, scoped, tag = 'input window, operand 1, single buffered']
    #allocation6 [shape = 's32[1]{0}', space=sflag, size = 0x4, scoped, tag = 'scoped memory for tpu_custom_call.1']
    #allocation7 [shape = 'u8[32768]{0}', space=vmem, size = 0x8000, scoped, tag = 'input window, operand 2, single buffered']
    #allocation8 [shape = 'u8[65536]{0}', space=vmem, size = 0x10000, scoped, tag = 'input window, operand 3, single buffered']
    #allocation9 [shape = 's32[1]{0}', space=sflag, size = 0x4, scoped, tag = 'scoped memory for tpu_custom_call.1']
    #allocation10 [shape = 'u8[65536]{0}', space=vmem, size = 0x10000, scoped, tag = 'input window, operand 4, single buffered']
    #allocation11 [shape = 'u8[16384]{0}', space=vmem, size = 0x4000, scoped, tag = 'output window, operand 0, single buffered']
    %10 = vsyncpa [#allocation3], 0
    %11 = vsyncpa [#allocation6], 0
    %12 = vsyncpa [#allocation9], 0
    %13 = vsyncpa [#allocation4], 0
    // Predicated region
    $region2: #{tpu_custom_call.1} parent=1 // pred_check
      _
    $region3: #{tpu_custom_call.1} parent=1 // pred_check_branch
      %15 = sbr.rel (0) target = $region5
    $region4: #{tpu_custom_call.1} parent=1 // pred_region
      %17 = vsyncadd [#allocation3], 0
      %s18 = sshll.u32 %s0, 4
      %s19 = int_to_ptr.hbm [resolvable:$true] %s18
      %s20 = sshll.u32 [#allocation2], 4
      %s21 = int_to_ptr.vmem [resolvable:$true] %s20
      %26 = dma.hbm_to_vmem [thread:$0]  %s19, 2048, %s21, [#allocation3], 128, 128, 8
    $region5: #{tpu_custom_call.1} parent=1 // pred_fallthru
      _
    // Predicated region
    $region6: #{tpu_custom_call.1} parent=1 // pred_check
      _
    $region7: #{tpu_custom_call.1} parent=1 // pred_check_branch
      %28 = sbr.rel (0) target = $region9
    $region8: #{tpu_custom_call.1} parent=1 // pred_region
      %30 = vsyncadd [#allocation6], 0
      %s31 = sshll.u32 %s1, 4
      %s32 = int_to_ptr.hbm [resolvable:$true] %s31
      %s33 = sshll.u32 [#allocation5], 4
      %s34 = int_to_ptr.vmem [resolvable:$true] %s33
      %39 = dma.hbm_to_vmem [thread:$0]  %s32, 1024, %s34, [#allocation6], 64, 64, 4
    $region9: #{tpu_custom_call.1} parent=1 // pred_fallthru
      _
    // Predicated region
    $region10: #{tpu_custom_call.1} parent=1 // pred_check
      _
    $region11: #{tpu_custom_call.1} parent=1 // pred_check_branch
      %41 = sbr.rel (0) target = $region13
    $region12: #{tpu_custom_call.1} parent=1 // pred_region
      %43 = vsyncadd [#allocation6], 0
      %s44 = sshll.u32 %s2, 4
      %s45 = int_to_ptr.hbm [resolvable:$true] %s44
      %s46 = sshll.u32 [#allocation7], 4
      %s47 = int_to_ptr.vmem [resolvable:$true] %s46
      %52 = dma.hbm_to_vmem [thread:$0]  %s45, 1024, %s47, [#allocation6], 64, 64, 4
    $region13: #{tpu_custom_call.1} parent=1 // pred_fallthru
      _
    // Predicated region
    $region14: #{tpu_custom_call.1} parent=1 // pred_check
      _
    $region15: #{tpu_custom_call.1} parent=1 // pred_check_branch
      %54 = sbr.rel (0) target = $region17
    $region16: #{tpu_custom_call.1} parent=1 // pred_region
      %56 = vsyncadd [#allocation9], 0
      %s57 = sshll.u32 %s3, 4
      %s58 = int_to_ptr.hbm [resolvable:$true] %s57
      %s59 = sshll.u32 [#allocation8], 4
      %s60 = int_to_ptr.vmem [resolvable:$true] %s59
      %65 = dma.hbm_to_vmem [thread:$0]  %s58, 2048, %s60, [#allocation9], 128, 128, 8
    $region17: #{tpu_custom_call.1} parent=1 // pred_fallthru
      _
    // Predicated region
    $region18: #{tpu_custom_call.1} parent=1 // pred_check
      _
    $region19: #{tpu_custom_call.1} parent=1 // pred_check_branch
      %67 = sbr.rel (0) target = $region21
    $region20: #{tpu_custom_call.1} parent=1 // pred_region
      %69 = vsyncadd [#allocation9], 0
      %s70 = sshll.u32 %s4, 4
      %s71 = int_to_ptr.hbm [resolvable:$true] %s70
      %s72 = sshll.u32 [#allocation10], 4
      %s73 = int_to_ptr.vmem [resolvable:$true] %s72
      %78 = dma.hbm_to_vmem [thread:$0]  %s71, 2048, %s73, [#allocation9], 128, 128, 8
    $region21: #{tpu_custom_call.1} parent=1 // pred_fallthru
      _
    // Predicated region
    $region22: #{tpu_custom_call.1} parent=1 // pred_check
      _
    $region23: #{tpu_custom_call.1} parent=1 // pred_check_branch
      %80 = sbr.rel (0) target = $region25
    $region24: #{tpu_custom_call.1} parent=1 // pred_region
      %82 = dma.done [#allocation3], 2048
    $region25: #{tpu_custom_call.1} parent=1 // pred_fallthru
      _
    // Predicated region
    $region26: #{tpu_custom_call.1} parent=1 // pred_check
      _
    $region27: #{tpu_custom_call.1} parent=1 // pred_check_branch
      %84 = sbr.rel (0) target = $region29
    $region28: #{tpu_custom_call.1} parent=1 // pred_region
      %86 = dma.done [#allocation6], 1024
    $region29: #{tpu_custom_call.1} parent=1 // pred_fallthru
      _
    // Predicated region
    $region30: #{tpu_custom_call.1} parent=1 // pred_check
      _
    $region31: #{tpu_custom_call.1} parent=1 // pred_check_branch
      %88 = sbr.rel (0) target = $region33
    $region32: #{tpu_custom_call.1} parent=1 // pred_region
      %90 = dma.done [#allocation6], 1024
    $region33: #{tpu_custom_call.1} parent=1 // pred_fallthru
      _
    // Predicated region
    $region34: #{tpu_custom_call.1} parent=1 // pred_check
      _
    $region35: #{tpu_custom_call.1} parent=1 // pred_check_branch
      %92 = sbr.rel (0) target = $region37
    $region36: #{tpu_custom_call.1} parent=1 // pred_region
      %94 = dma.done [#allocation9], 2048
    $region37: #{tpu_custom_call.1} parent=1 // pred_fallthru
      _
    // Predicated region
    $region38: #{tpu_custom_call.1} parent=1 // pred_check
      _
    $region39: #{tpu_custom_call.1} parent=1 // pred_check_branch
      %96 = sbr.rel (0) target = $region41
    $region40: #{tpu_custom_call.1} parent=1 // pred_region
      %98 = dma.done [#allocation9], 2048
    $region41: #{tpu_custom_call.1} parent=1 // pred_fallthru
      _
    %v99 = vld [vmem:[#allocation2] sm:$0xff]
    %v100 = vld [vmem:[#allocation2 + $0x8] sm:$0xff]
    %v101 = vld [vmem:[#allocation2 + $0x10] sm:$0xff]
    %v102 = vld [vmem:[#allocation2 + $0x18] sm:$0xff]
    %v103 = vld [vmem:[#allocation2 + $0x20] sm:$0xff]
    %v104 = vld [vmem:[#allocation2 + $0x28] sm:$0xff]
    %v105 = vld [vmem:[#allocation2 + $0x30] sm:$0xff]
    %v106 = vld [vmem:[#allocation2 + $0x38] sm:$0xff]
    %v107 = vld [vmem:[#allocation2 + $0x40] sm:$0xff]
    %v108 = vld [vmem:[#allocation2 + $0x48] sm:$0xff]
    %v109 = vld [vmem:[#allocation2 + $0x50] sm:$0xff]
    %v110 = vld [vmem:[#allocation2 + $0x58] sm:$0xff]
    %v111 = vld [vmem:[#allocation2 + $0x60] sm:$0xff]
    %v112 = vld [vmem:[#allocation2 + $0x68] sm:$0xff]
    %v113 = vld [vmem:[#allocation2 + $0x70] sm:$0xff]
    %v114 = vld [vmem:[#allocation2 + $0x78] sm:$0xff]
    %v115 = vround.ne.pseudo %v99
    %v116 = vround.ne.pseudo %v100
    %v117 = vround.ne.pseudo %v101
    %v118 = vround.ne.pseudo %v102
    %v119 = vround.ne.pseudo %v103
    %v120 = vround.ne.pseudo %v104
    %v121 = vround.ne.pseudo %v105
    %v122 = vround.ne.pseudo %v106
    %v123 = vround.ne.pseudo %v107
    %v124 = vround.ne.pseudo %v108
    %v125 = vround.ne.pseudo %v109
    %v126 = vround.ne.pseudo %v110
    %v127 = vround.ne.pseudo %v111
    %v128 = vround.ne.pseudo %v112
    %v129 = vround.ne.pseudo %v113
    %v130 = vround.ne.pseudo %v114
    %v131 = vmax.f32 %v115, 0.0
    %v132 = vmax.f32 %v116, 0.0
    %v133 = vmax.f32 %v117, 0.0
    %v134 = vmax.f32 %v118, 0.0
    %v135 = vmax.f32 %v119, 0.0
    %v136 = vmax.f32 %v120, 0.0
    %v137 = vmax.f32 %v121, 0.0
    %v138 = vmax.f32 %v122, 0.0
    %v139 = vmax.f32 %v123, 0.0
    %v140 = vmax.f32 %v124, 0.0
    %v141 = vmax.f32 %v125, 0.0
    %v142 = vmax.f32 %v126, 0.0
    %v143 = vmax.f32 %v127, 0.0
    %v144 = vmax.f32 %v128, 0.0
    %v145 = vmax.f32 %v129, 0.0
    %v146 = vmax.f32 %v130, 0.0
    %v147 = vmin.f32 %v131, 255.0
    %v148 = vmin.f32 %v132, 255.0
    %v149 = vmin.f32 %v133, 255.0
    %v150 = vmin.f32 %v134, 255.0
    %v151 = vmin.f32 %v135, 255.0
    %v152 = vmin.f32 %v136, 255.0
    %v153 = vmin.f32 %v137, 255.0
    %v154 = vmin.f32 %v138, 255.0
    %v155 = vmin.f32 %v139, 255.0
    %v156 = vmin.f32 %v140, 255.0
    %v157 = vmin.f32 %v141, 255.0
    %v158 = vmin.f32 %v142, 255.0
    %v159 = vmin.f32 %v143, 255.0
    %v160 = vmin.f32 %v144, 255.0
    %v161 = vmin.f32 %v145, 255.0
    %v162 = vmin.f32 %v146, 255.0
    %v163 = vsub.f32 %v147, 128.0
    %v164 = vsub.f32 %v148, 128.0
    %v165 = vsub.f32 %v149, 128.0
    %v166 = vsub.f32 %v150, 128.0
    %v167 = vsub.f32 %v151, 128.0
    %v168 = vsub.f32 %v152, 128.0
    %v169 = vsub.f32 %v153, 128.0
    %v170 = vsub.f32 %v154, 128.0
    %v171 = vsub.f32 %v155, 128.0
    %v172 = vsub.f32 %v156, 128.0
    %v173 = vsub.f32 %v157, 128.0
    %v174 = vsub.f32 %v158, 128.0
    %v175 = vsub.f32 %v159, 128.0
    %v176 = vsub.f32 %v160, 128.0
    %v177 = vsub.f32 %v161, 128.0
    %v178 = vsub.f32 %v162, 128.0
    %v179 = vpack.c.bf16 %v164, %v163
    %v180 = vpack.c.bf16 %v166, %v165
    %v181 = vpack.c.bf16 %v168, %v167
    %v182 = vpack.c.bf16 %v170, %v169
    %v183 = vpack.c.bf16 %v172, %v171
    %v184 = vpack.c.bf16 %v174, %v173
    %v185 = vpack.c.bf16 %v176, %v175
    %v186 = vpack.c.bf16 %v178, %v177
    %v187 = vld [vmem:[#allocation5] sm:$0xf]
    %v188 = vld [vmem:[#allocation5 + $0x4] sm:$0xf]
    %v189 = vld [vmem:[#allocation5 + $0x8] sm:$0xf]
    %v190 = vld [vmem:[#allocation5 + $0xc] sm:$0xf]
    %v191 = vld [vmem:[#allocation5 + $0x10] sm:$0xf]
    %v192 = vld [vmem:[#allocation5 + $0x14] sm:$0xf]
    %v193 = vld [vmem:[#allocation5 + $0x18] sm:$0xf]
    %v194 = vld [vmem:[#allocation5 + $0x1c] sm:$0xf]
    %v195 = vld [vmem:[#allocation5 + $0x20] sm:$0xf]
    %v196 = vld [vmem:[#allocation5 + $0x24] sm:$0xf]
    %v197 = vld [vmem:[#allocation5 + $0x28] sm:$0xf]
    %v198 = vld [vmem:[#allocation5 + $0x2c] sm:$0xf]
    %v199 = vld [vmem:[#allocation5 + $0x30] sm:$0xf]
    %v200 = vld [vmem:[#allocation5 + $0x34] sm:$0xf]
    %v201 = vld [vmem:[#allocation5 + $0x38] sm:$0xf]
    %v202 = vld [vmem:[#allocation5 + $0x3c] sm:$0xf]
    %v203 = vld [vmem:[#allocation7] sm:$0xf]
    %v204 = vld [vmem:[#allocation7 + $0x4] sm:$0xf]
    %v205 = vld [vmem:[#allocation7 + $0x8] sm:$0xf]
    %v206 = vld [vmem:[#allocation7 + $0xc] sm:$0xf]
    %v207 = vld [vmem:[#allocation7 + $0x10] sm:$0xf]
    %v208 = vld [vmem:[#allocation7 + $0x14] sm:$0xf]
    %v209 = vld [vmem:[#allocation7 + $0x18] sm:$0xf]
    %v210 = vld [vmem:[#allocation7 + $0x1c] sm:$0xf]
    %v211 = vld [vmem:[#allocation7 + $0x20] sm:$0xf]
    %v212 = vld [vmem:[#allocation7 + $0x24] sm:$0xf]
    %v213 = vld [vmem:[#allocation7 + $0x28] sm:$0xf]
    %v214 = vld [vmem:[#allocation7 + $0x2c] sm:$0xf]
    %v215 = vld [vmem:[#allocation7 + $0x30] sm:$0xf]
    %v216 = vld [vmem:[#allocation7 + $0x34] sm:$0xf]
    %v217 = vld [vmem:[#allocation7 + $0x38] sm:$0xf]
    %v218 = vld [vmem:[#allocation7 + $0x3c] sm:$0xf]
    %v219 = vld [vmem:[#allocation8] sm:$0xff]
    %v220 = vld [vmem:[#allocation8 + $0x8] sm:$0xff]
    %v221 = vld [vmem:[#allocation8 + $0x10] sm:$0xff]
    %v222 = vld [vmem:[#allocation8 + $0x18] sm:$0xff]
    %v223 = vld [vmem:[#allocation8 + $0x20] sm:$0xff]
    %v224 = vld [vmem:[#allocation8 + $0x28] sm:$0xff]
    %v225 = vld [vmem:[#allocation8 + $0x30] sm:$0xff]
    %v226 = vld [vmem:[#allocation8 + $0x38] sm:$0xff]
    %v227 = vld [vmem:[#allocation8 + $0x40] sm:$0xff]
    %v228 = vld [vmem:[#allocation8 + $0x48] sm:$0xff]
    %v229 = vld [vmem:[#allocation8 + $0x50] sm:$0xff]
    %v230 = vld [vmem:[#allocation8 + $0x58] sm:$0xff]
    %v231 = vld [vmem:[#allocation8 + $0x60] sm:$0xff]
    %v232 = vld [vmem:[#allocation8 + $0x68] sm:$0xff]
    %v233 = vld [vmem:[#allocation8 + $0x70] sm:$0xff]
    %v234 = vld [vmem:[#allocation8 + $0x78] sm:$0xff]
    %v235 = vld [vmem:[#allocation10] sm:$0xff]
    %v236 = vld [vmem:[#allocation10 + $0x8] sm:$0xff]
    %v237 = vld [vmem:[#allocation10 + $0x10] sm:$0xff]
    %v238 = vld [vmem:[#allocation10 + $0x18] sm:$0xff]
    %v239 = vld [vmem:[#allocation10 + $0x20] sm:$0xff]
    %v240 = vld [vmem:[#allocation10 + $0x28] sm:$0xff]
    %v241 = vld [vmem:[#allocation10 + $0x30] sm:$0xff]
    %v242 = vld [vmem:[#allocation10 + $0x38] sm:$0xff]
    %v243 = vld [vmem:[#allocation10 + $0x40] sm:$0xff]
    %v244 = vld [vmem:[#allocation10 + $0x48] sm:$0xff]
    %v245 = vld [vmem:[#allocation10 + $0x50] sm:$0xff]
    %v246 = vld [vmem:[#allocation10 + $0x58] sm:$0xff]
    %v247 = vld [vmem:[#allocation10 + $0x60] sm:$0xff]
    %v248 = vld [vmem:[#allocation10 + $0x68] sm:$0xff]
    %v249 = vld [vmem:[#allocation10 + $0x70] sm:$0xff]
    %v250 = vld [vmem:[#allocation10 + $0x78] sm:$0xff]
    %v267 = vunpack.c.l.b16 %v187
    %v268 = vunpack.c.l.b16 %v188
    %v269 = vunpack.c.l.b16 %v189
    %v270 = vunpack.c.l.b16 %v190
    %v271 = vunpack.c.l.b16 %v191
    %v272 = vunpack.c.l.b16 %v192
    %v273 = vunpack.c.l.b16 %v193
    %v274 = vunpack.c.l.b16 %v194
    %v275 = vunpack.c.l.b16 %v195
    %v276 = vunpack.c.l.b16 %v196
    %v277 = vunpack.c.l.b16 %v197
    %v278 = vunpack.c.l.b16 %v198
    %v279 = vunpack.c.l.b16 %v199
    %v280 = vunpack.c.l.b16 %v200
    %v281 = vunpack.c.l.b16 %v201
    %v282 = vunpack.c.l.b16 %v202
    %v283 = vpack.c.b16 %v268, %v267
    %v284 = vpack.c.b16 %v270, %v269
    %v285 = vpack.c.b16 %v272, %v271
    %v286 = vpack.c.b16 %v274, %v273
    %v287 = vpack.c.b16 %v276, %v275
    %v288 = vpack.c.b16 %v278, %v277
    %v289 = vpack.c.b16 %v280, %v279
    %v290 = vpack.c.b16 %v282, %v281
    %299 = vmatpush.bf16.msra.mxu0 %v186
    %300 = vmatpush.bf16.msra.mxu0 %v185
    %301 = vmatpush.bf16.msra.mxu0 %v184
    %302 = vmatpush.bf16.msra.mxu0 %v183
    %303 = vmatpush.bf16.msra.mxu0 %v182
    %304 = vmatpush.bf16.msra.mxu0 %v181
    %305 = vmatpush.bf16.msra.mxu0 %v180
    %306 = vmatpush.bf16.msra.mxu0 %v179
    %307 = vmatmul.bf16.gmra.mxu0 %v283
    %v308 = vpop.f32.mrf.mxu0
    %v309 = vadd.f32 0.0, %v308
    %v310 = vpop.f32.mrf.mxu0
    %v311 = vadd.f32 0.0, %v310
    %312 = vmatmul.bf16.gmra.mxu0 %v284
    %v313 = vpop.f32.mrf.mxu0
    %v314 = vadd.f32 0.0, %v313
    %v315 = vpop.f32.mrf.mxu0
    %v316 = vadd.f32 0.0, %v315
    %317 = vmatmul.bf16.gmra.mxu0 %v285
    %v318 = vpop.f32.mrf.mxu0
    %v319 = vadd.f32 0.0, %v318
    %v320 = vpop.f32.mrf.mxu0
    %v321 = vadd.f32 0.0, %v320
    %322 = vmatmul.bf16.gmra.mxu0 %v286
    %v323 = vpop.f32.mrf.mxu0
    %v324 = vadd.f32 0.0, %v323
    %v325 = vpop.f32.mrf.mxu0
    %v326 = vadd.f32 0.0, %v325
    %327 = vmatmul.bf16.gmra.mxu0 %v287
    %v328 = vpop.f32.mrf.mxu0
    %v329 = vadd.f32 0.0, %v328
    %v330 = vpop.f32.mrf.mxu0
    %v331 = vadd.f32 0.0, %v330
    %332 = vmatmul.bf16.gmra.mxu0 %v288
    %v333 = vpop.f32.mrf.mxu0
    %v334 = vadd.f32 0.0, %v333
    %v335 = vpop.f32.mrf.mxu0
    %v336 = vadd.f32 0.0, %v335
    %337 = vmatmul.bf16.gmra.mxu0 %v289
    %v338 = vpop.f32.mrf.mxu0
    %v339 = vadd.f32 0.0, %v338
    %v340 = vpop.f32.mrf.mxu0
    %v341 = vadd.f32 0.0, %v340
    %342 = vmatmul.bf16.gmra.mxu0 %v290
    %v343 = vpop.f32.mrf.mxu0
    %v344 = vadd.f32 0.0, %v343
    %v345 = vpop.f32.mrf.mxu0
    %v346 = vadd.f32 0.0, %v345
    %347 = vdwg.mxu0
    %v348 = vpack.c.bf16 %v311, %v309
    %v349 = vpack.c.bf16 %v316, %v314
    %v350 = vpack.c.bf16 %v321, %v319
    %v351 = vpack.c.bf16 %v326, %v324
    %v352 = vpack.c.bf16 %v331, %v329
    %v353 = vpack.c.bf16 %v336, %v334
    %v354 = vpack.c.bf16 %v341, %v339
    %v355 = vpack.c.bf16 %v346, %v344
    %v372 = vunpack.c.l.b16 %v203
    %v373 = vunpack.c.l.b16 %v204
    %v374 = vunpack.c.l.b16 %v205
    %v375 = vunpack.c.l.b16 %v206
    %v376 = vunpack.c.l.b16 %v207
    %v377 = vunpack.c.l.b16 %v208
    %v378 = vunpack.c.l.b16 %v209
    %v379 = vunpack.c.l.b16 %v210
    %v380 = vunpack.c.l.b16 %v211
    %v381 = vunpack.c.l.b16 %v212
    %v382 = vunpack.c.l.b16 %v213
    %v383 = vunpack.c.l.b16 %v214
    %v384 = vunpack.c.l.b16 %v215
    %v385 = vunpack.c.l.b16 %v216
    %v386 = vunpack.c.l.b16 %v217
    %v387 = vunpack.c.l.b16 %v218
    %v388 = vpack.c.b16 %v373, %v372
    %v389 = vpack.c.b16 %v375, %v374
    %v390 = vpack.c.b16 %v377, %v376
    %v391 = vpack.c.b16 %v379, %v378
    %v392 = vpack.c.b16 %v381, %v380
    %v393 = vpack.c.b16 %v383, %v382
    %v394 = vpack.c.b16 %v385, %v384
    %v395 = vpack.c.b16 %v387, %v386
    %404 = vmatpush.bf16.msra.mxu0 %v395
    %405 = vmatpush.bf16.msra.mxu0 %v394
    %406 = vmatpush.bf16.msra.mxu0 %v393
    %407 = vmatpush.bf16.msra.mxu0 %v392
    %408 = vmatpush.bf16.msra.mxu0 %v391
    %409 = vmatpush.bf16.msra.mxu0 %v390
    %410 = vmatpush.bf16.msra.mxu0 %v389
    %411 = vmatpush.bf16.msra.mxu0 %v388
    %412 = vmatmul.bf16.gmra.mxu0 %v348
    %v413 = vpop.f32.mrf.mxu0
    %v414 = vadd.f32 0.0, %v413
    %v415 = vpop.f32.mrf.mxu0
    %v416 = vadd.f32 0.0, %v415
    %417 = vmatmul.bf16.gmra.mxu0 %v349
    %v418 = vpop.f32.mrf.mxu0
    %v419 = vadd.f32 0.0, %v418
    %v420 = vpop.f32.mrf.mxu0
    %v421 = vadd.f32 0.0, %v420
    %422 = vmatmul.bf16.gmra.mxu0 %v350
    %v423 = vpop.f32.mrf.mxu0
    %v424 = vadd.f32 0.0, %v423
    %v425 = vpop.f32.mrf.mxu0
    %v426 = vadd.f32 0.0, %v425
    %427 = vmatmul.bf16.gmra.mxu0 %v351
    %v428 = vpop.f32.mrf.mxu0
    %v429 = vadd.f32 0.0, %v428
    %v430 = vpop.f32.mrf.mxu0
    %v431 = vadd.f32 0.0, %v430
    %432 = vmatmul.bf16.gmra.mxu0 %v352
    %v433 = vpop.f32.mrf.mxu0
    %v434 = vadd.f32 0.0, %v433
    %v435 = vpop.f32.mrf.mxu0
    %v436 = vadd.f32 0.0, %v435
    %437 = vmatmul.bf16.gmra.mxu0 %v353
    %v438 = vpop.f32.mrf.mxu0
    %v439 = vadd.f32 0.0, %v438
    %v440 = vpop.f32.mrf.mxu0
    %v441 = vadd.f32 0.0, %v440
    %442 = vmatmul.bf16.gmra.mxu0 %v354
    %v443 = vpop.f32.mrf.mxu0
    %v444 = vadd.f32 0.0, %v443
    %v445 = vpop.f32.mrf.mxu0
    %v446 = vadd.f32 0.0, %v445
    %447 = vmatmul.bf16.gmra.mxu0 %v355
    %v448 = vpop.f32.mrf.mxu0
    %v449 = vadd.f32 0.0, %v448
    %v450 = vpop.f32.mrf.mxu0
    %v451 = vadd.f32 0.0, %v450
    %452 = vdwg.mxu0
    %v453 = vmul.f32 %v414, %v235
    %v454 = vmul.f32 %v416, %v236
    %v455 = vmul.f32 %v419, %v237
    %v456 = vmul.f32 %v421, %v238
    %v457 = vmul.f32 %v424, %v239
    %v458 = vmul.f32 %v426, %v240
    %v459 = vmul.f32 %v429, %v241
    %v460 = vmul.f32 %v431, %v242
    %v461 = vmul.f32 %v434, %v243
    %v462 = vmul.f32 %v436, %v244
    %v463 = vmul.f32 %v439, %v245
    %v464 = vmul.f32 %v441, %v246
    %v465 = vmul.f32 %v444, %v247
    %v466 = vmul.f32 %v446, %v248
    %v467 = vmul.f32 %v449, %v249
    %v468 = vmul.f32 %v451, %v250
    %v469 = vround.ne.pseudo %v453
    %v470 = vround.ne.pseudo %v454
    %v471 = vround.ne.pseudo %v455
    %v472 = vround.ne.pseudo %v456
    %v473 = vround.ne.pseudo %v457
    %v474 = vround.ne.pseudo %v458
    %v475 = vround.ne.pseudo %v459
    %v476 = vround.ne.pseudo %v460
    %v477 = vround.ne.pseudo %v461
    %v478 = vround.ne.pseudo %v462
    %v479 = vround.ne.pseudo %v463
    %v480 = vround.ne.pseudo %v464
    %v481 = vround.ne.pseudo %v465
    %v482 = vround.ne.pseudo %v466
    %v483 = vround.ne.pseudo %v467
    %v484 = vround.ne.pseudo %v468
    %v485 = vmul.f32 %v469, %v219
    %v486 = vmul.f32 %v470, %v220
    %v487 = vmul.f32 %v471, %v221
    %v488 = vmul.f32 %v472, %v222
    %v489 = vmul.f32 %v473, %v223
    %v490 = vmul.f32 %v474, %v224
    %v491 = vmul.f32 %v475, %v225
    %v492 = vmul.f32 %v476, %v226
    %v493 = vmul.f32 %v477, %v227
    %v494 = vmul.f32 %v478, %v228
    %v495 = vmul.f32 %v479, %v229
    %v496 = vmul.f32 %v480, %v230
    %v497 = vmul.f32 %v481, %v231
    %v498 = vmul.f32 %v482, %v232
    %v499 = vmul.f32 %v483, %v233
    %v500 = vmul.f32 %v484, %v234
    %v501 = vpack.c.bf16 %v486, %v485
    %v502 = vpack.c.bf16 %v488, %v487
    %v503 = vpack.c.bf16 %v490, %v489
    %v504 = vpack.c.bf16 %v492, %v491
    %v505 = vpack.c.bf16 %v494, %v493
    %v506 = vpack.c.bf16 %v496, %v495
    %v507 = vpack.c.bf16 %v498, %v497
    %v508 = vpack.c.bf16 %v500, %v499
    %509 = vmatpush.bf16.msra.mxu0 %v290
    %510 = vmatpush.bf16.msra.mxu0 %v289
    %511 = vmatpush.bf16.msra.mxu0 %v288
    %512 = vmatpush.bf16.msra.mxu0 %v287
    %513 = vmatpush.bf16.msra.mxu0 %v286
    %514 = vmatpush.bf16.msra.mxu0 %v285
    %515 = vmatpush.bf16.msra.mxu0 %v284
    %516 = vmatpush.bf16.msra.mxu0 %v283
    %517 = vmatmul.bf16.gmra.mxu0 %v501
    %v518 = vpop.f32.mrf.mxu0
    %v519 = vadd.f32 0.0, %v518
    %v520 = vpop.f32.mrf.mxu0
    %v521 = vadd.f32 0.0, %v520
    %522 = vmatmul.bf16.gmra.mxu0 %v502
    %v523 = vpop.f32.mrf.mxu0
    %v524 = vadd.f32 0.0, %v523
    %v525 = vpop.f32.mrf.mxu0
    %v526 = vadd.f32 0.0, %v525
    %527 = vmatmul.bf16.gmra.mxu0 %v503
    %v528 = vpop.f32.mrf.mxu0
    %v529 = vadd.f32 0.0, %v528
    %v530 = vpop.f32.mrf.mxu0
    %v531 = vadd.f32 0.0, %v530
    %532 = vmatmul.bf16.gmra.mxu0 %v504
    %v533 = vpop.f32.mrf.mxu0
    %v534 = vadd.f32 0.0, %v533
    %v535 = vpop.f32.mrf.mxu0
    %v536 = vadd.f32 0.0, %v535
    %537 = vmatmul.bf16.gmra.mxu0 %v505
    %v538 = vpop.f32.mrf.mxu0
    %v539 = vadd.f32 0.0, %v538
    %v540 = vpop.f32.mrf.mxu0
    %v541 = vadd.f32 0.0, %v540
    %542 = vmatmul.bf16.gmra.mxu0 %v506
    %v543 = vpop.f32.mrf.mxu0
    %v544 = vadd.f32 0.0, %v543
    %v545 = vpop.f32.mrf.mxu0
    %v546 = vadd.f32 0.0, %v545
    %547 = vmatmul.bf16.gmra.mxu0 %v507
    %v548 = vpop.f32.mrf.mxu0
    %v549 = vadd.f32 0.0, %v548
    %v550 = vpop.f32.mrf.mxu0
    %v551 = vadd.f32 0.0, %v550
    %552 = vmatmul.bf16.gmra.mxu0 %v508
    %v553 = vpop.f32.mrf.mxu0
    %v554 = vadd.f32 0.0, %v553
    %v555 = vpop.f32.mrf.mxu0
    %v556 = vadd.f32 0.0, %v555
    %557 = vdwg.mxu0
    %v558 = vpack.c.bf16 %v521, %v519
    %v559 = vpack.c.bf16 %v526, %v524
    %v560 = vpack.c.bf16 %v531, %v529
    %v561 = vpack.c.bf16 %v536, %v534
    %v562 = vpack.c.bf16 %v541, %v539
    %v563 = vpack.c.bf16 %v546, %v544
    %v564 = vpack.c.bf16 %v551, %v549
    %v565 = vpack.c.bf16 %v556, %v554
    %566 = vmatpush.bf16.msra.mxu0 %v565
    %567 = vmatpush.bf16.msra.mxu0 %v564
    %568 = vmatpush.bf16.msra.mxu0 %v563
    %569 = vmatpush.bf16.msra.mxu0 %v562
    %570 = vmatpush.bf16.msra.mxu0 %v561
    %571 = vmatpush.bf16.msra.mxu0 %v560
    %572 = vmatpush.bf16.msra.mxu0 %v559
    %573 = vmatpush.bf16.msra.mxu0 %v558
    %574 = vmatmul.bf16.gmra.mxu0 %v388
    %v575 = vpop.f32.mrf.mxu0
    %v576 = vadd.f32 128.0, %v575
    %v577 = vpop.f32.mrf.mxu0
    %v578 = vadd.f32 128.0, %v577
    %579 = vmatmul.bf16.gmra.mxu0 %v389
    %v580 = vpop.f32.mrf.mxu0
    %v581 = vadd.f32 128.0, %v580
    %v582 = vpop.f32.mrf.mxu0
    %v583 = vadd.f32 128.0, %v582
    %584 = vmatmul.bf16.gmra.mxu0 %v390
    %v585 = vpop.f32.mrf.mxu0
    %v586 = vadd.f32 128.0, %v585
    %v587 = vpop.f32.mrf.mxu0
    %v588 = vadd.f32 128.0, %v587
    %589 = vmatmul.bf16.gmra.mxu0 %v391
    %v590 = vpop.f32.mrf.mxu0
    %v591 = vadd.f32 128.0, %v590
    %v592 = vpop.f32.mrf.mxu0
    %v593 = vadd.f32 128.0, %v592
    %594 = vmatmul.bf16.gmra.mxu0 %v392
    %v595 = vpop.f32.mrf.mxu0
    %v596 = vadd.f32 128.0, %v595
    %v597 = vpop.f32.mrf.mxu0
    %v598 = vadd.f32 128.0, %v597
    %599 = vmatmul.bf16.gmra.mxu0 %v393
    %v600 = vpop.f32.mrf.mxu0
    %v601 = vadd.f32 128.0, %v600
    %v602 = vpop.f32.mrf.mxu0
    %v603 = vadd.f32 128.0, %v602
    %604 = vmatmul.bf16.gmra.mxu0 %v394
    %v605 = vpop.f32.mrf.mxu0
    %v606 = vadd.f32 128.0, %v605
    %v607 = vpop.f32.mrf.mxu0
    %v608 = vadd.f32 128.0, %v607
    %609 = vmatmul.bf16.gmra.mxu0 %v395
    %v610 = vpop.f32.mrf.mxu0
    %v611 = vadd.f32 128.0, %v610
    %v612 = vpop.f32.mrf.mxu0
    %v613 = vadd.f32 128.0, %v612
    %614 = vdwg.mxu0
    %v615 = vround.ne.pseudo %v576
    %v616 = vround.ne.pseudo %v578
    %v617 = vround.ne.pseudo %v581
    %v618 = vround.ne.pseudo %v583
    %v619 = vround.ne.pseudo %v586
    %v620 = vround.ne.pseudo %v588
    %v621 = vround.ne.pseudo %v591
    %v622 = vround.ne.pseudo %v593
    %v623 = vround.ne.pseudo %v596
    %v624 = vround.ne.pseudo %v598
    %v625 = vround.ne.pseudo %v601
    %v626 = vround.ne.pseudo %v603
    %v627 = vround.ne.pseudo %v606
    %v628 = vround.ne.pseudo %v608
    %v629 = vround.ne.pseudo %v611
    %v630 = vround.ne.pseudo %v613
    %v631 = vmax.f32 %v615, 0.0
    %v632 = vmax.f32 %v616, 0.0
    %v633 = vmax.f32 %v617, 0.0
    %v634 = vmax.f32 %v618, 0.0
    %v635 = vmax.f32 %v619, 0.0
    %v636 = vmax.f32 %v620, 0.0
    %v637 = vmax.f32 %v621, 0.0
    %v638 = vmax.f32 %v622, 0.0
    %v639 = vmax.f32 %v623, 0.0
    %v640 = vmax.f32 %v624, 0.0
    %v641 = vmax.f32 %v625, 0.0
    %v642 = vmax.f32 %v626, 0.0
    %v643 = vmax.f32 %v627, 0.0
    %v644 = vmax.f32 %v628, 0.0
    %v645 = vmax.f32 %v629, 0.0
    %v646 = vmax.f32 %v630, 0.0
    %v647 = vmin.f32 %v631, 255.0
    %v648 = vmin.f32 %v632, 255.0
    %v649 = vmin.f32 %v633, 255.0
    %v650 = vmin.f32 %v634, 255.0
    %v651 = vmin.f32 %v635, 255.0
    %v652 = vmin.f32 %v636, 255.0
    %v653 = vmin.f32 %v637, 255.0
    %v654 = vmin.f32 %v638, 255.0
    %v655 = vmin.f32 %v639, 255.0
    %v656 = vmin.f32 %v640, 255.0
    %v657 = vmin.f32 %v641, 255.0
    %v658 = vmin.f32 %v642, 255.0
    %v659 = vmin.f32 %v643, 255.0
    %v660 = vmin.f32 %v644, 255.0
    %v661 = vmin.f32 %v645, 255.0
    %v662 = vmin.f32 %v646, 255.0
    %v663 = vmax.f32 %v647, 0.0
    %v664 = vmax.f32 %v648, 0.0
    %v665 = vmax.f32 %v649, 0.0
    %v666 = vmax.f32 %v650, 0.0
    %v667 = vmax.f32 %v651, 0.0
    %v668 = vmax.f32 %v652, 0.0
    %v669 = vmax.f32 %v653, 0.0
    %v670 = vmax.f32 %v654, 0.0
    %v671 = vmax.f32 %v655, 0.0
    %v672 = vmax.f32 %v656, 0.0
    %v673 = vmax.f32 %v657, 0.0
    %v674 = vmax.f32 %v658, 0.0
    %v675 = vmax.f32 %v659, 0.0
    %v676 = vmax.f32 %v660, 0.0
    %v677 = vmax.f32 %v661, 0.0
    %v678 = vmax.f32 %v662, 0.0
    %v679 = vmin.f32 %v663, 255.0
    %v680 = vmin.f32 %v664, 255.0
    %v681 = vmin.f32 %v665, 255.0
    %v682 = vmin.f32 %v666, 255.0
    %v683 = vmin.f32 %v667, 255.0
    %v684 = vmin.f32 %v668, 255.0
    %v685 = vmin.f32 %v669, 255.0
    %v686 = vmin.f32 %v670, 255.0
    %v687 = vmin.f32 %v671, 255.0
    %v688 = vmin.f32 %v672, 255.0
    %v689 = vmin.f32 %v673, 255.0
    %v690 = vmin.f32 %v674, 255.0
    %v691 = vmin.f32 %v675, 255.0
    %v692 = vmin.f32 %v676, 255.0
    %v693 = vmin.f32 %v677, 255.0
    %v694 = vmin.f32 %v678, 255.0
    %v695 = vcvt.f32.s32.to.zero.pseudo %v679
    %v696 = vcvt.f32.s32.to.zero.pseudo %v680
    %v697 = vcvt.f32.s32.to.zero.pseudo %v681
    %v698 = vcvt.f32.s32.to.zero.pseudo %v682
    %v699 = vcvt.f32.s32.to.zero.pseudo %v683
    %v700 = vcvt.f32.s32.to.zero.pseudo %v684
    %v701 = vcvt.f32.s32.to.zero.pseudo %v685
    %v702 = vcvt.f32.s32.to.zero.pseudo %v686
    %v703 = vcvt.f32.s32.to.zero.pseudo %v687
    %v704 = vcvt.f32.s32.to.zero.pseudo %v688
    %v705 = vcvt.f32.s32.to.zero.pseudo %v689
    %v706 = vcvt.f32.s32.to.zero.pseudo %v690
    %v707 = vcvt.f32.s32.to.zero.pseudo %v691
    %v708 = vcvt.f32.s32.to.zero.pseudo %v692
    %v709 = vcvt.f32.s32.to.zero.pseudo %v693
    %v710 = vcvt.f32.s32.to.zero.pseudo %v694
    %v711 = vpack.c.b16 %v696, %v695
    %v712 = vpack.c.b16 %v698, %v697
    %v713 = vpack.c.b8 %v712, %v711
    %v714 = vpack.c.b16 %v700, %v699
    %v715 = vpack.c.b16 %v702, %v701
    %v716 = vpack.c.b8 %v715, %v714
    %v717 = vpack.c.b16 %v704, %v703
    %v718 = vpack.c.b16 %v706, %v705
    %v719 = vpack.c.b8 %v718, %v717
    %v720 = vpack.c.b16 %v708, %v707
    %v721 = vpack.c.b16 %v710, %v709
    %v722 = vpack.c.b8 %v721, %v720
    %723 = vst [vmem:[#allocation11] sm:$0xff] %v713
    %724 = vst [vmem:[#allocation11 + $0x8] sm:$0xff] %v716
    %725 = vst [vmem:[#allocation11 + $0x10] sm:$0xff] %v719
    %726 = vst [vmem:[#allocation11 + $0x18] sm:$0xff] %v722
    // Predicated region
    $region42: #{tpu_custom_call.1} parent=1 // pred_check
      _
    $region43: #{tpu_custom_call.1} parent=1 // pred_check_branch
      %728 = sbr.rel (0) target = $region45
    $region44: #{tpu_custom_call.1} parent=1 // pred_region
      %730 = vsyncadd [#allocation4], 0
      %s731 = sshll.u32 [#allocation11], 4
      %s732 = int_to_ptr.vmem [resolvable:$true] %s731
      %s733 = sshll.u32 %s5, 4
      %s734 = int_to_ptr.hbm [resolvable:$true] %s733
      %739 = dma.vmem_to_hbm [thread:$0]  %s732, 512, %s734, [#allocation4], 128, 128, 8
    $region45: #{tpu_custom_call.1} parent=1 // pred_fallthru
      _
    // Predicated region
    $region46: #{tpu_custom_call.1} parent=1 // pred_check
      _
    $region47: #{tpu_custom_call.1} parent=1 // pred_check_branch
      %741 = sbr.rel (0) target = $region49
    $region48: #{tpu_custom_call.1} parent=1 // pred_region
      %743 = dma.done [#allocation4], 512
    $region49: #{tpu_custom_call.1} parent=1 // pred_fallthru
      _
    %744 = vsyncpa [#allocation3], 1
    %745 = vsyncpa [#allocation6], 1
    %746 = vsyncpa [#allocation9], 1
    %747 = vsyncpa [#allocation4], 1

</llo_original>
